<compile_context>
chip_gen: v6e
topology: v6e:2x2x1
jax: 0.10.0
libtpu: 0.0.40
codegen_flags: <defaults>
</compile_context>

<pallas_src>
import jax
import jax.numpy as jnp
from jax.experimental import pallas as pl
from jax.experimental.pallas import tpu as pltpu

N_H = 3  # hidden width fixed at 3 by the module definition


def tweetnet_kernel(x_ref, w1_ref, w2_ref, w3_ref, w4_ref, b_ref, o_ref):
    out_w = o_ref.shape[1]

    # ---- Layer 1 (in -> 3, padded to 128 MXU columns): bf16 operands, f32 accumulate.
    x = x_ref[...].astype(jnp.bfloat16)                                   # (TB, in_p)
    h = jnp.dot(x, w1_ref[...], preferred_element_type=jnp.float32)       # (TB, 128) f32
    h = jnp.maximum(h + b_ref[0:1, :], 0.0)

    # ---- Layer 2 (3 -> 3, padded 128x128).  Padded columns stay exactly zero.
    h = jnp.dot(h.astype(jnp.bfloat16), w2_ref[...],
                preferred_element_type=jnp.float32)
    h = jnp.maximum(h + b_ref[1:2, :], 0.0)

    # ---- Layer 3 (3 -> 3, padded 128x128).
    h = jnp.dot(h.astype(jnp.bfloat16), w3_ref[...],
                preferred_element_type=jnp.float32)
    h = jnp.maximum(h + b_ref[2:3, :], 0.0)

    # ---- Layer 4 (3 -> out, padded 128x128), no activation.
    y = jnp.dot(h.astype(jnp.bfloat16), w4_ref[...],
                preferred_element_type=jnp.float32)
    y = y + b_ref[3:4, :]                                                  # (TB, 128)

    o_ref[...] = y[:, 0:out_w].astype(o_ref.dtype)


def _round_up(n, m):
    return ((n + m - 1) // m) * m


def pack_params(params, in_size, out_size):
    """Zero-pad weights to MXU tiles (bf16) and biases to one (8,128) f32 slab."""
    in_p = _round_up(in_size, 16)  # multiple of 16: keeps bf16 sublane tiling aligned
    w1p = jnp.zeros((in_p, 128), jnp.bfloat16)
    w1p = w1p.at[:in_size, :N_H].set(params["w1"].astype(jnp.bfloat16))
    w2p = jnp.zeros((128, 128), jnp.bfloat16)
    w2p = w2p.at[:N_H, :N_H].set(params["w2"].astype(jnp.bfloat16))
    w3p = jnp.zeros((128, 128), jnp.bfloat16)
    w3p = w3p.at[:N_H, :N_H].set(params["w3"].astype(jnp.bfloat16))
    w4p = jnp.zeros((128, 128), jnp.bfloat16)
    w4p = w4p.at[:N_H, :out_size].set(params["w4"].astype(jnp.bfloat16))

    bias = jnp.zeros((8, 128), jnp.float32)
    bias = bias.at[0, :N_H].set(params["b1"].astype(jnp.float32))
    bias = bias.at[1, :N_H].set(params["b2"].astype(jnp.float32))
    bias = bias.at[2, :N_H].set(params["b3"].astype(jnp.float32))
    bias = bias.at[3, :out_size].set(params["b4"].astype(jnp.float32))
    return w1p, w2p, w3p, w4p, bias


def tweetnet_forward(x, params, *, block_rows=4096, vmem_budget_bytes=16 << 20):
    """x: (B, input_size) float32; params: w1..w4 as (in,out), b1..b4 as (out,)."""
    B, in_size = x.shape
    out_size = params["w4"].shape[1]
    assert out_size <= 128, "tile the output dim for out_size > 128"

    in_p = _round_up(in_size, 16)
    w1p, w2p, w3p, w4p, bias = pack_params(params, in_size, out_size)

    if in_p != in_size:  # pad features; extra w1 rows are zero so result is unchanged
        x = jnp.pad(x, ((0, 0), (0, in_p - in_size)))

    # --- Batch tile from a VMEM budget (x/out blocks are lane-padded to 128 in VMEM,
    # double-buffered; plus ~8 lane-padded f32 intermediates held by the compiler).
    in_lanes = _round_up(in_p, 128)
    out_lanes = _round_up(out_size, 128)
    bytes_per_row = 4 * (2 * in_lanes + 2 * out_lanes + 8 * 128)
    tb = max(8, (vmem_budget_bytes // bytes_per_row) // 8 * 8)
    tb = min(tb, _round_up(block_rows, 8))
    # v7x: keep >=2 grid steps so both TensorCores get work (harmless on v5e/v6e).
    tb = min(tb, max(8, _round_up(-(-B // 2), 8)))

    bp_rows = _round_up(B, tb)
    if bp_rows != B:
        x = jnp.pad(x, ((0, bp_rows - B), (0, 0)))

    grid = (bp_rows // tb,)
    flops = 2 * bp_rows * (in_size * N_H + N_H * N_H + N_H * N_H + N_H * out_size)
    bytes_accessed = ((bp_rows * in_p + bp_rows * out_size) * 4
                      + (w1p.size + w2p.size + w3p.size + w4p.size) * 2
                      + bias.size * 4)

    out = pl.pallas_call(
        tweetnet_kernel,
        out_shape=jax.ShapeDtypeStruct((bp_rows, out_size), jnp.float32),
        grid=grid,
        in_specs=[
            pl.BlockSpec((tb, in_p), lambda i: (i, 0)),       # batch-tiled input
            pl.BlockSpec((in_p, 128), lambda i: (0, 0)),      # w1 (resident)
            pl.BlockSpec((128, 128), lambda i: (0, 0)),       # w2 (resident)
            pl.BlockSpec((128, 128), lambda i: (0, 0)),       # w3 (resident)
            pl.BlockSpec((128, 128), lambda i: (0, 0)),       # w4 (resident)
            pl.BlockSpec((8, 128), lambda i: (0, 0)),         # biases (resident)
        ],
        out_specs=pl.BlockSpec((tb, out_size), lambda i: (i, 0)),
        compiler_params=pltpu.CompilerParams(
            dimension_semantics=("parallel",)),
        cost_estimate=pl.CostEstimate(
            flops=flops, transcendentals=0, bytes_accessed=bytes_accessed),
    )(x, w1p, w2p, w3p, w4p, bias)
    return out[:B]


def init_params(key, input_size, output_size):
    """Deterministic init matching the layer shapes of TweetNet.__init__ (PyTorch default range)."""
    dims = [(input_size, N_H), (N_H, N_H), (N_H, N_H), (N_H, output_size)]
    params = {}
    for i, (fan_in, fan_out) in enumerate(dims, start=1):
        key, kw, kb = jax.random.split(key, 3)
        bound = 1.0 / jnp.sqrt(jnp.float32(fan_in))
        params[f"w{i}"] = jax.random.uniform(
            kw, (fan_in, fan_out), jnp.float32, minval=-bound, maxval=bound)
        params[f"b{i}"] = jax.random.uniform(
            kb, (fan_out,), jnp.float32, minval=-bound, maxval=bound)
    return params


def reference_forward(x, params):
    h = jnp.maximum(x @ params["w1"] + params["b1"], 0.0)
    h = jnp.maximum(h @ params["w2"] + params["b2"], 0.0)
    h = jnp.maximum(h @ params["w3"] + params["b3"], 0.0)
    return h @ params["w4"] + params["b4"]


if __name__ == "__main__":
    key = jax.random.PRNGKey(0)
    input_size, output_size, batch = 32, 4, 8

    kx, kp, kx2 = jax.random.split(key, 3)
    x = jax.random.normal(kx, (batch, input_size), jnp.float32)
    params = init_params(kp, input_size, output_size)

    out = jax.block_until_ready(tweetnet_forward(x, params))
    ref = reference_forward(x, params)
    assert out.shape == (batch, output_size)
    # bf16 MXU operands (f32 accumulate) -> loosened tolerance vs the f32 reference.
    assert jnp.allclose(out, ref, atol=5e-2, rtol=5e-2)

    # Exercise the multi-step batch grid + padding path (batch not a multiple of the tile).
    x2 = jax.random.normal(kx2, (200, input_size), jnp.float32)
    out2 = jax.block_until_ready(tweetnet_forward(x2, params, block_rows=64))
    assert out2.shape == (200, output_size)
    assert jnp.allclose(out2, reference_forward(x2, params), atol=5e-2, rtol=5e-2)

    print("KERNEL_OK")
</pallas_src>

<mosaic_0001>
module attributes {stable_mosaic.version = 11 : i64} {
  func.func @tweetnet_kernel(%arg0: i32, %arg1: memref<8x32xf32, #tpu.memory_space<vmem>>, %arg2: memref<32x128xbf16, #tpu.memory_space<vmem>>, %arg3: memref<128x128xbf16, #tpu.memory_space<vmem>>, %arg4: memref<128x128xbf16, #tpu.memory_space<vmem>>, %arg5: memref<128x128xbf16, #tpu.memory_space<vmem>>, %arg6: memref<8x128xf32, #tpu.memory_space<vmem>>, %arg7: memref<8x4xf32, #tpu.memory_space<vmem>>) attributes {dimension_semantics = [#tpu.dimension_semantics<parallel>], iteration_bounds = array<i64: 1>, scalar_prefetch = 0 : i64, scratch_operands = 0 : i64, tpu.core_type = #tpu.core_type<tc>, window_params = [{transform_indices = @transform_0, window_bounds = array<i64: 8, 32>}, {pipeline_mode = #tpu.pipeline_mode<synchronous>, transform_indices = @transform_1, window_bounds = array<i64: 32, 128>}, {pipeline_mode = #tpu.pipeline_mode<synchronous>, transform_indices = @transform_2, window_bounds = array<i64: 128, 128>}, {pipeline_mode = #tpu.pipeline_mode<synchronous>, transform_indices = @transform_3, window_bounds = array<i64: 128, 128>}, {pipeline_mode = #tpu.pipeline_mode<synchronous>, transform_indices = @transform_4, window_bounds = array<i64: 128, 128>}, {pipeline_mode = #tpu.pipeline_mode<synchronous>, transform_indices = @transform_5, window_bounds = array<i64: 8, 128>}, {transform_indices = @transform_6, window_bounds = array<i64: 8, 4>}]} {
    %c0 = arith.constant 0 : index
    %c0_0 = arith.constant 0 : index
    %0 = vector.load %arg1[%c0, %c0_0] : memref<8x32xf32, #tpu.memory_space<vmem>>, vector<8x32xf32>
    %1 = arith.truncf %0 : vector<8x32xf32> to vector<8x32xbf16>
    %c0_1 = arith.constant 0 : index
    %c0_2 = arith.constant 0 : index
    %2 = vector.load %arg2[%c0_1, %c0_2] : memref<32x128xbf16, #tpu.memory_space<vmem>>, vector<32x128xbf16>
    %cst = arith.constant dense<0.000000e+00> : vector<8x128xf32>
    %3 = tpu.matmul %1, %2, %cst {dimension_numbers = #tpu.dot_dimension_numbers<[1], [0], [0], [1], [0, 0, 1, 1], [], []>} : vector<8x32xbf16>, vector<32x128xbf16>, vector<8x128xf32> -> vector<8x128xf32>
    %c0_3 = arith.constant 0 : index
    %c0_4 = arith.constant 0 : index
    %4 = vector.load %arg6[%c0_3, %c0_4] : memref<8x128xf32, #tpu.memory_space<vmem>>, vector<1x128xf32>
    %5 = vector.broadcast %4 : vector<1x128xf32> to vector<8x128xf32>
    %6 = arith.addf %3, %5 : vector<8x128xf32>
    %cst_5 = arith.constant 0.000000e+00 : f32
    %7 = vector.broadcast %cst_5 : f32 to vector<8x128xf32>
    %8 = arith.maximumf %6, %7 : vector<8x128xf32>
    %9 = arith.truncf %8 : vector<8x128xf32> to vector<8x128xbf16>
    %c0_6 = arith.constant 0 : index
    %c0_7 = arith.constant 0 : index
    %10 = vector.load %arg3[%c0_6, %c0_7] : memref<128x128xbf16, #tpu.memory_space<vmem>>, vector<128x128xbf16>
    %cst_8 = arith.constant dense<0.000000e+00> : vector<8x128xf32>
    %11 = tpu.matmul %9, %10, %cst_8 {dimension_numbers = #tpu.dot_dimension_numbers<[1], [0], [0], [1], [0, 0, 1, 1], [], []>} : vector<8x128xbf16>, vector<128x128xbf16>, vector<8x128xf32> -> vector<8x128xf32>
    %c1 = arith.constant 1 : index
    %c0_9 = arith.constant 0 : index
    %12 = vector.load %arg6[%c1, %c0_9] : memref<8x128xf32, #tpu.memory_space<vmem>>, vector<1x128xf32>
    %13 = vector.broadcast %12 : vector<1x128xf32> to vector<8x128xf32>
    %14 = arith.addf %11, %13 : vector<8x128xf32>
    %cst_10 = arith.constant 0.000000e+00 : f32
    %15 = vector.broadcast %cst_10 : f32 to vector<8x128xf32>
    %16 = arith.maximumf %14, %15 : vector<8x128xf32>
    %17 = arith.truncf %16 : vector<8x128xf32> to vector<8x128xbf16>
    %c0_11 = arith.constant 0 : index
    %c0_12 = arith.constant 0 : index
    %18 = vector.load %arg4[%c0_11, %c0_12] : memref<128x128xbf16, #tpu.memory_space<vmem>>, vector<128x128xbf16>
    %cst_13 = arith.constant dense<0.000000e+00> : vector<8x128xf32>
    %19 = tpu.matmul %17, %18, %cst_13 {dimension_numbers = #tpu.dot_dimension_numbers<[1], [0], [0], [1], [0, 0, 1, 1], [], []>} : vector<8x128xbf16>, vector<128x128xbf16>, vector<8x128xf32> -> vector<8x128xf32>
    %c2 = arith.constant 2 : index
    %c0_14 = arith.constant 0 : index
    %20 = vector.load %arg6[%c2, %c0_14] : memref<8x128xf32, #tpu.memory_space<vmem>>, vector<1x128xf32>
    %21 = vector.broadcast %20 : vector<1x128xf32> to vector<8x128xf32>
    %22 = arith.addf %19, %21 : vector<8x128xf32>
    %cst_15 = arith.constant 0.000000e+00 : f32
    %23 = vector.broadcast %cst_15 : f32 to vector<8x128xf32>
    %24 = arith.maximumf %22, %23 : vector<8x128xf32>
    %25 = arith.truncf %24 : vector<8x128xf32> to vector<8x128xbf16>
    %c0_16 = arith.constant 0 : index
    %c0_17 = arith.constant 0 : index
    %26 = vector.load %arg5[%c0_16, %c0_17] : memref<128x128xbf16, #tpu.memory_space<vmem>>, vector<128x128xbf16>
    %cst_18 = arith.constant dense<0.000000e+00> : vector<8x128xf32>
    %27 = tpu.matmul %25, %26, %cst_18 {dimension_numbers = #tpu.dot_dimension_numbers<[1], [0], [0], [1], [0, 0, 1, 1], [], []>} : vector<8x128xbf16>, vector<128x128xbf16>, vector<8x128xf32> -> vector<8x128xf32>
    %c3 = arith.constant 3 : index
    %c0_19 = arith.constant 0 : index
    %28 = vector.load %arg6[%c3, %c0_19] : memref<8x128xf32, #tpu.memory_space<vmem>>, vector<1x128xf32>
    %29 = vector.broadcast %28 : vector<1x128xf32> to vector<8x128xf32>
    %30 = arith.addf %27, %29 : vector<8x128xf32>
    %31 = vector.extract_strided_slice %30 {offsets = [0, 0], sizes = [8, 4], strides = [1, 1]} : vector<8x128xf32> to vector<8x4xf32>
    %c0_20 = arith.constant 0 : index
    %c0_21 = arith.constant 0 : index
    %32 = vector.load %arg7[%c0_20, %c0_21] : memref<8x4xf32, #tpu.memory_space<vmem>>, vector<8x4xf32>
    tpu.vector_store %arg7[%c0_20, %c0_21], %31 {strides = array<i32>} : memref<8x4xf32, #tpu.memory_space<vmem>>, vector<8x4xf32>,
    return
  }
  func.func @transform_0(%arg0: i32) -> (i32, i32) {
    %c0_i32 = arith.constant 0 : i32
    %c0_i32_0 = arith.constant 0 : i32
    return %arg0, %c0_i32 : i32, i32
  }
  func.func @transform_1(%arg0: i32) -> (i32, i32) {
    %c0_i32 = arith.constant 0 : i32
    %c0_i32_0 = arith.constant 0 : i32
    %c0_i32_1 = arith.constant 0 : i32
    return %c0_i32, %c0_i32_0 : i32, i32
  }
  func.func @transform_2(%arg0: i32) -> (i32, i32) {
    %c0_i32 = arith.constant 0 : i32
    %c0_i32_0 = arith.constant 0 : i32
    %c0_i32_1 = arith.constant 0 : i32
    return %c0_i32, %c0_i32_0 : i32, i32
  }
  func.func @transform_3(%arg0: i32) -> (i32, i32) {
    %c0_i32 = arith.constant 0 : i32
    %c0_i32_0 = arith.constant 0 : i32
    %c0_i32_1 = arith.constant 0 : i32
    return %c0_i32, %c0_i32_0 : i32, i32
  }
  func.func @transform_4(%arg0: i32) -> (i32, i32) {
    %c0_i32 = arith.constant 0 : i32
    %c0_i32_0 = arith.constant 0 : i32
    %c0_i32_1 = arith.constant 0 : i32
    return %c0_i32, %c0_i32_0 : i32, i32
  }
  func.func @transform_5(%arg0: i32) -> (i32, i32) {
    %c0_i32 = arith.constant 0 : i32
    %c0_i32_0 = arith.constant 0 : i32
    %c0_i32_1 = arith.constant 0 : i32
    return %c0_i32, %c0_i32_0 : i32, i32
  }
  func.func @transform_6(%arg0: i32) -> (i32, i32) {
    %c0_i32 = arith.constant 0 : i32
    %c0_i32_0 = arith.constant 0 : i32
    return %arg0, %c0_i32 : i32, i32
  }
}

</mosaic_0001>

<llo_original>
// kernel: tpu_custom_call.1
$region0: #{tpu_custom_call.1}
  #allocation0 [shape = 'u32[]', space=smem, size = 0x4, offset = 0x4, fixed_abs, tag = 'smem constant byte address 0x4 - core index']
  #allocation1 [shape = 'u32[144,128]{1,0:T(1,128)}', space=vmem, size = 0x12000, scoped, tag = 'internal scratch']
  %s0 = inlined_call_operand.hbm [shape: f32[8,32], index: 0, kind: input, shape index: {}]
  %s1 = inlined_call_operand.hbm [shape: bf16[32,128], index: 1, kind: input, shape index: {}]
  %s2 = inlined_call_operand.hbm [shape: bf16[128,128], index: 2, kind: input, shape index: {}]
  %s3 = inlined_call_operand.hbm [shape: bf16[128,128], index: 3, kind: input, shape index: {}]
  %s4 = inlined_call_operand.hbm [shape: bf16[128,128], index: 4, kind: input, shape index: {}]
  %s5 = inlined_call_operand.vmem [shape: f32[8,128], index: 5, kind: input, shape index: {}]
  %s6 = inlined_call_operand.vmem [shape: f32[8,4], index: 6, kind: output, shape index: {}]
  %s7 = sld [smem:[#allocation0]]
  $region54: #{tpu_custom_call.1} parent=0
    _
  %s9 = ssub.s32 1, %s7
  %s10 = scalar_select 0, %s9, %s7
  $region1: #{tpu_custom_call.1} parent=0
    #allocation2 [shape = 'u8[4096]{0}', space=vmem, size = 0x1000, scoped, tag = 'input window, operand 0, single buffered']
    #allocation3 [shape = 's32[1]{0}', space=sflag, size = 0x4, scoped, tag = 'scoped memory for tpu_custom_call.1']
    #allocation4 [shape = 'u8[8192]{0}', space=vmem, size = 0x2000, scoped, tag = 'input window, operand 1, single buffered']
    #allocation5 [shape = 's32[1]{0}', space=sflag, size = 0x4, scoped, tag = 'scoped memory for tpu_custom_call.1']
    #allocation6 [shape = 'u8[32768]{0}', space=vmem, size = 0x8000, scoped, tag = 'input window, operand 2, single buffered']
    #allocation7 [shape = 'u8[32768]{0}', space=vmem, size = 0x8000, scoped, tag = 'input window, operand 3, single buffered']
    #allocation8 [shape = 's32[1]{0}', space=sflag, size = 0x4, scoped, tag = 'scoped memory for tpu_custom_call.1']
    #allocation9 [shape = 'u8[32768]{0}', space=vmem, size = 0x8000, scoped, tag = 'input window, operand 4, single buffered']
    %11 = vsyncpa [#allocation3], 0
    %12 = vsyncpa [#allocation5], 0
    %13 = vsyncpa [#allocation8], 0
    // Predicated region
    $region2: #{tpu_custom_call.1} parent=1 // pred_check
      _
    $region3: #{tpu_custom_call.1} parent=1 // pred_check_branch
      %15 = sbr.rel (0) target = $region5
    $region4: #{tpu_custom_call.1} parent=1 // pred_region
      %s17 = ssub.s32 128, 128
      %18 = vsyncadd [#allocation3], %s17
      %s20 = sshll.u32 [#allocation2], 4
      %s21 = int_to_ptr.vmem [resolvable:$true] %s20
      %23 = dma.hbm_to_vmem [thread:$0]  %s0, 128, %s21, [#allocation3]
    $region5: #{tpu_custom_call.1} parent=1 // pred_fallthru
      _
    // Predicated region
    $region6: #{tpu_custom_call.1} parent=1 // pred_check
      _
    $region7: #{tpu_custom_call.1} parent=1 // pred_check_branch
      %25 = sbr.rel (0) target = $region9
    $region8: #{tpu_custom_call.1} parent=1 // pred_region
      %s27 = ssub.s32 256, 256
      %28 = vsyncadd [#allocation5], %s27
      %s29 = sshll.u32 [#allocation4], 4
      %s30 = int_to_ptr.vmem [resolvable:$true] %s29
      %35 = dma.hbm_to_vmem [thread:$0]  %s1, 256, %s30, [#allocation5], 64, 64, 4
    $region9: #{tpu_custom_call.1} parent=1 // pred_fallthru
      _
    // Predicated region
    $region10: #{tpu_custom_call.1} parent=1 // pred_check
      _
    $region11: #{tpu_custom_call.1} parent=1 // pred_check_branch
      %37 = sbr.rel (0) target = $region13
    $region12: #{tpu_custom_call.1} parent=1 // pred_region
      %s39 = ssub.s32 1024, 1024
      %40 = vsyncadd [#allocation5], %s39
      %s41 = sshll.u32 [#allocation6], 4
      %s42 = int_to_ptr.vmem [resolvable:$true] %s41
      %47 = dma.hbm_to_vmem [thread:$0]  %s2, 1024, %s42, [#allocation5], 64, 64, 4
    $region13: #{tpu_custom_call.1} parent=1 // pred_fallthru
      _
    // Predicated region
    $region14: #{tpu_custom_call.1} parent=1 // pred_check
      _
    $region15: #{tpu_custom_call.1} parent=1 // pred_check_branch
      %49 = sbr.rel (0) target = $region17
    $region16: #{tpu_custom_call.1} parent=1 // pred_region
      %s51 = ssub.s32 1024, 1024
      %52 = vsyncadd [#allocation8], %s51
      %s53 = sshll.u32 [#allocation7], 4
      %s54 = int_to_ptr.vmem [resolvable:$true] %s53
      %59 = dma.hbm_to_vmem [thread:$0]  %s3, 1024, %s54, [#allocation8], 64, 64, 4
    $region17: #{tpu_custom_call.1} parent=1 // pred_fallthru
      _
    // Predicated region
    $region18: #{tpu_custom_call.1} parent=1 // pred_check
      _
    $region19: #{tpu_custom_call.1} parent=1 // pred_check_branch
      %61 = sbr.rel (0) target = $region21
    $region20: #{tpu_custom_call.1} parent=1 // pred_region
      %s63 = ssub.s32 1024, 1024
      %64 = vsyncadd [#allocation8], %s63
      %s65 = sshll.u32 [#allocation9], 4
      %s66 = int_to_ptr.vmem [resolvable:$true] %s65
      %71 = dma.hbm_to_vmem [thread:$0]  %s4, 1024, %s66, [#allocation8], 64, 64, 4
    $region21: #{tpu_custom_call.1} parent=1 // pred_fallthru
      _
    // Predicated region
    $region22: #{tpu_custom_call.1} parent=1 // pred_check
      _
    $region23: #{tpu_custom_call.1} parent=1 // pred_check_branch
      %73 = sbr.rel (0) target = $region25
    $region24: #{tpu_custom_call.1} parent=1 // pred_region
      _
    $region25: #{tpu_custom_call.1} parent=1 // pred_fallthru
      _
    // Predicated region
    $region26: #{tpu_custom_call.1} parent=1 // pred_check
      _
    $region27: #{tpu_custom_call.1} parent=1 // pred_check_branch
      %75 = sbr.rel (0) target = $region29
    $region28: #{tpu_custom_call.1} parent=1 // pred_region
      %76 = dma.done [#allocation3], 128
    $region29: #{tpu_custom_call.1} parent=1 // pred_fallthru
      _
    // Predicated region
    $region30: #{tpu_custom_call.1} parent=1 // pred_check
      _
    $region31: #{tpu_custom_call.1} parent=1 // pred_check_branch
      %78 = sbr.rel (0) target = $region33
    $region32: #{tpu_custom_call.1} parent=1 // pred_region
      %79 = dma.done [#allocation5], 256
    $region33: #{tpu_custom_call.1} parent=1 // pred_fallthru
      _
    // Predicated region
    $region34: #{tpu_custom_call.1} parent=1 // pred_check
      _
    $region35: #{tpu_custom_call.1} parent=1 // pred_check_branch
      %81 = sbr.rel (0) target = $region37
    $region36: #{tpu_custom_call.1} parent=1 // pred_region
      %82 = dma.done [#allocation5], 1024
    $region37: #{tpu_custom_call.1} parent=1 // pred_fallthru
      _
    // Predicated region
    $region38: #{tpu_custom_call.1} parent=1 // pred_check
      _
    $region39: #{tpu_custom_call.1} parent=1 // pred_check_branch
      %84 = sbr.rel (0) target = $region41
    $region40: #{tpu_custom_call.1} parent=1 // pred_region
      %85 = dma.done [#allocation8], 1024
    $region41: #{tpu_custom_call.1} parent=1 // pred_fallthru
      _
    // Predicated region
    $region42: #{tpu_custom_call.1} parent=1 // pred_check
      _
    $region43: #{tpu_custom_call.1} parent=1 // pred_check_branch
      %87 = sbr.rel (0) target = $region45
    $region44: #{tpu_custom_call.1} parent=1 // pred_region
      %88 = dma.done [#allocation8], 1024
    $region45: #{tpu_custom_call.1} parent=1 // pred_fallthru
      _
    %v90 = vld [vmem:[#allocation2] sm:$0xff]
    %v91 = vpack.c.bf16 %v90, %v90
    %v92 = vld [vmem:[#allocation4] sm:$0xf]
    %v93 = vld [vmem:[#allocation4 + $0x4] sm:$0xf]
    %v94 = vld [vmem:[#allocation4 + $0x8] sm:$0xf]
    %v95 = vld [vmem:[#allocation4 + $0xc] sm:$0xf]
    %v96 = vld [vmem:[%s5] sm:$0x1]
    %v97 = vlaneseq
    %v98 = vshrl.u32 %v97, 7
    %v99 = vsub.s32 0, %v98
    %v100 = vrot.slane %v96, %v99
    %v105 = vunpack.c.l.b16 %v92
    %v106 = vunpack.c.l.b16 %v93
    %v107 = vunpack.c.l.b16 %v94
    %v108 = vunpack.c.l.b16 %v95
    %v109 = vpack.c.b16 %v106, %v105
    %v110 = vpack.c.b16 %v108, %v107
    %vm113 = vcmask 261120
    %v115 = vsel %vm113, %v91, 0
    %117 = vmatprep.subr.bf16.mxu0 0
    %118 = vmatpush1.bf16.msra.mxu0 0
    %119 = vmatprep.subr.bf16.mxu0 0
    %120 = vmatpush1.bf16.msra.mxu0 0
    %121 = vmatprep.subr.bf16.mxu0 0
    %122 = vmatpush1.bf16.msra.mxu0 0
    %123 = vmatprep.subr.bf16.mxu0 0
    %124 = vmatpush1.bf16.msra.mxu0 0
    %125 = vmatprep.subr.bf16.mxu0 0
    %126 = vmatpush1.bf16.msra.mxu0 0
    %127 = vmatprep.subr.bf16.mxu0 0
    %128 = vmatpush1.bf16.msra.mxu0 0
    %129 = vmatprep.subr.bf16.mxu0 0
    %130 = vmatpush1.bf16.msra.mxu0 %v110
    %131 = vmatprep.subr.bf16.mxu0 0
    %132 = vmatpush1.bf16.msra.mxu0 %v109
    %133 = vmatprep.subr.bf16.mxu0 0
    %134 = vmatpush2.bf16.msra.mxu0 0
    %135 = vmatprep.subr.bf16.mxu0 0
    %136 = vmatpush2.bf16.msra.mxu0 0
    %137 = vmatprep.subr.bf16.mxu0 0
    %138 = vmatpush2.bf16.msra.mxu0 0
    %139 = vmatprep.subr.bf16.mxu0 0
    %140 = vmatpush2.bf16.msra.mxu0 0
    %141 = vmatprep.subr.bf16.mxu0 0
    %142 = vmatpush2.bf16.msra.mxu0 0
    %143 = vmatprep.subr.bf16.mxu0 0
    %144 = vmatpush2.bf16.msra.mxu0 0
    %145 = vmatprep.subr.bf16.mxu0 0
    %146 = vmatpush2.bf16.msra.mxu0 0
    %147 = vmatprep.subr.bf16.mxu0 0
    %148 = vmatpush2.bf16.msra.mxu0 0
    %149 = vmatprep.mubr.bf16.mxu0 0
    %150 = vmatmul.mubr.bf16.gmra.mxu0 %v115
    %v151 = vpop.f32.mrf.mxu0
    %v152 = vadd.f32 %v100, %v151
    %v153 = vpop.f32.mrf.mxu0
    %v154 = vpop.f32.mrf.mxu0
    %v155 = vpop.f32.mrf.mxu0
    %156 = vdwg.mxu0
    %v157 = vmax.f32 %v152, 0.0
    %v158 = vpack.c.bf16 %v157, %v157
    %v159 = vld [vmem:[#allocation6] sm:$0xf]
    %v160 = vld [vmem:[#allocation6 + $0x4] sm:$0xf]
    %v161 = vld [vmem:[#allocation6 + $0x8] sm:$0xf]
    %v162 = vld [vmem:[#allocation6 + $0xc] sm:$0xf]
    %v163 = vld [vmem:[#allocation6 + $0x10] sm:$0xf]
    %v164 = vld [vmem:[#allocation6 + $0x14] sm:$0xf]
    %v165 = vld [vmem:[#allocation6 + $0x18] sm:$0xf]
    %v166 = vld [vmem:[#allocation6 + $0x1c] sm:$0xf]
    %v167 = vld [vmem:[#allocation6 + $0x20] sm:$0xf]
    %v168 = vld [vmem:[#allocation6 + $0x24] sm:$0xf]
    %v169 = vld [vmem:[#allocation6 + $0x28] sm:$0xf]
    %v170 = vld [vmem:[#allocation6 + $0x2c] sm:$0xf]
    %v171 = vld [vmem:[#allocation6 + $0x30] sm:$0xf]
    %v172 = vld [vmem:[#allocation6 + $0x34] sm:$0xf]
    %v173 = vld [vmem:[#allocation6 + $0x38] sm:$0xf]
    %v174 = vld [vmem:[#allocation6 + $0x3c] sm:$0xf]
    %v175 = vld [vmem:[%s5 + $0x1] sm:$0x1]
    %v176 = vlaneseq
    %v177 = vshrl.u32 %v176, 7
    %v178 = vsub.s32 0, %v177
    %v179 = vrot.slane %v175, %v178
    %v196 = vunpack.c.l.b16 %v159
    %v197 = vunpack.c.l.b16 %v160
    %v198 = vunpack.c.l.b16 %v161
    %v199 = vunpack.c.l.b16 %v162
    %v200 = vunpack.c.l.b16 %v163
    %v201 = vunpack.c.l.b16 %v164
    %v202 = vunpack.c.l.b16 %v165
    %v203 = vunpack.c.l.b16 %v166
    %v204 = vunpack.c.l.b16 %v167
    %v205 = vunpack.c.l.b16 %v168
    %v206 = vunpack.c.l.b16 %v169
    %v207 = vunpack.c.l.b16 %v170
    %v208 = vunpack.c.l.b16 %v171
    %v209 = vunpack.c.l.b16 %v172
    %v210 = vunpack.c.l.b16 %v173
    %v211 = vunpack.c.l.b16 %v174
    %v212 = vpack.c.b16 %v197, %v196
    %v213 = vpack.c.b16 %v199, %v198
    %v214 = vpack.c.b16 %v201, %v200
    %v215 = vpack.c.b16 %v203, %v202
    %v216 = vpack.c.b16 %v205, %v204
    %v217 = vpack.c.b16 %v207, %v206
    %v218 = vpack.c.b16 %v209, %v208
    %v219 = vpack.c.b16 %v211, %v210
    %228 = vmatprep.subr.bf16.mxu0 0
    %229 = vmatpush1.bf16.msra.mxu0 %v219
    %230 = vmatprep.subr.bf16.mxu0 0
    %231 = vmatpush1.bf16.msra.mxu0 %v218
    %232 = vmatprep.subr.bf16.mxu0 0
    %233 = vmatpush1.bf16.msra.mxu0 %v217
    %234 = vmatprep.subr.bf16.mxu0 0
    %235 = vmatpush1.bf16.msra.mxu0 %v216
    %236 = vmatprep.subr.bf16.mxu0 0
    %237 = vmatpush1.bf16.msra.mxu0 %v215
    %238 = vmatprep.subr.bf16.mxu0 0
    %239 = vmatpush1.bf16.msra.mxu0 %v214
    %240 = vmatprep.subr.bf16.mxu0 0
    %241 = vmatpush1.bf16.msra.mxu0 %v213
    %242 = vmatprep.subr.bf16.mxu0 0
    %243 = vmatpush1.bf16.msra.mxu0 %v212
    %244 = vmatprep.subr.bf16.mxu0 0
    %245 = vmatpush2.bf16.msra.mxu0 0
    %246 = vmatprep.subr.bf16.mxu0 0
    %247 = vmatpush2.bf16.msra.mxu0 0
    %248 = vmatprep.subr.bf16.mxu0 0
    %249 = vmatpush2.bf16.msra.mxu0 0
    %250 = vmatprep.subr.bf16.mxu0 0
    %251 = vmatpush2.bf16.msra.mxu0 0
    %252 = vmatprep.subr.bf16.mxu0 0
    %253 = vmatpush2.bf16.msra.mxu0 0
    %254 = vmatprep.subr.bf16.mxu0 0
    %255 = vmatpush2.bf16.msra.mxu0 0
    %256 = vmatprep.subr.bf16.mxu0 0
    %257 = vmatpush2.bf16.msra.mxu0 0
    %258 = vmatprep.subr.bf16.mxu0 0
    %259 = vmatpush2.bf16.msra.mxu0 0
    %260 = vmatprep.mubr.bf16.mxu0 0
    %261 = vmatmul.mubr.bf16.gmra.mxu0 %v158
    %v262 = vpop.f32.mrf.mxu0
    %v263 = vadd.f32 %v179, %v262
    %v264 = vpop.f32.mrf.mxu0
    %v265 = vpop.f32.mrf.mxu0
    %v266 = vpop.f32.mrf.mxu0
    %267 = vdwg.mxu0
    %v268 = vmax.f32 %v263, 0.0
    %v269 = vpack.c.bf16 %v268, %v268
    %v270 = vld [vmem:[#allocation7] sm:$0xf]
    %v271 = vld [vmem:[#allocation7 + $0x4] sm:$0xf]
    %v272 = vld [vmem:[#allocation7 + $0x8] sm:$0xf]
    %v273 = vld [vmem:[#allocation7 + $0xc] sm:$0xf]
    %v274 = vld [vmem:[#allocation7 + $0x10] sm:$0xf]
    %v275 = vld [vmem:[#allocation7 + $0x14] sm:$0xf]
    %v276 = vld [vmem:[#allocation7 + $0x18] sm:$0xf]
    %v277 = vld [vmem:[#allocation7 + $0x1c] sm:$0xf]
    %v278 = vld [vmem:[#allocation7 + $0x20] sm:$0xf]
    %v279 = vld [vmem:[#allocation7 + $0x24] sm:$0xf]
    %v280 = vld [vmem:[#allocation7 + $0x28] sm:$0xf]
    %v281 = vld [vmem:[#allocation7 + $0x2c] sm:$0xf]
    %v282 = vld [vmem:[#allocation7 + $0x30] sm:$0xf]
    %v283 = vld [vmem:[#allocation7 + $0x34] sm:$0xf]
    %v284 = vld [vmem:[#allocation7 + $0x38] sm:$0xf]
    %v285 = vld [vmem:[#allocation7 + $0x3c] sm:$0xf]
    %v286 = vld [vmem:[%s5 + $0x2] sm:$0x1]
    %v287 = vlaneseq
    %v288 = vshrl.u32 %v287, 7
    %v289 = vsub.s32 0, %v288
    %v290 = vrot.slane %v286, %v289
    %v307 = vunpack.c.l.b16 %v270
    %v308 = vunpack.c.l.b16 %v271
    %v309 = vunpack.c.l.b16 %v272
    %v310 = vunpack.c.l.b16 %v273
    %v311 = vunpack.c.l.b16 %v274
    %v312 = vunpack.c.l.b16 %v275
    %v313 = vunpack.c.l.b16 %v276
    %v314 = vunpack.c.l.b16 %v277
    %v315 = vunpack.c.l.b16 %v278
    %v316 = vunpack.c.l.b16 %v279
    %v317 = vunpack.c.l.b16 %v280
    %v318 = vunpack.c.l.b16 %v281
    %v319 = vunpack.c.l.b16 %v282
    %v320 = vunpack.c.l.b16 %v283
    %v321 = vunpack.c.l.b16 %v284
    %v322 = vunpack.c.l.b16 %v285
    %v323 = vpack.c.b16 %v308, %v307
    %v324 = vpack.c.b16 %v310, %v309
    %v325 = vpack.c.b16 %v312, %v311
    %v326 = vpack.c.b16 %v314, %v313
    %v327 = vpack.c.b16 %v316, %v315
    %v328 = vpack.c.b16 %v318, %v317
    %v329 = vpack.c.b16 %v320, %v319
    %v330 = vpack.c.b16 %v322, %v321
    %339 = vmatprep.subr.bf16.mxu0 0
    %340 = vmatpush1.bf16.msra.mxu0 %v330
    %341 = vmatprep.subr.bf16.mxu0 0
    %342 = vmatpush1.bf16.msra.mxu0 %v329
    %343 = vmatprep.subr.bf16.mxu0 0
    %344 = vmatpush1.bf16.msra.mxu0 %v328
    %345 = vmatprep.subr.bf16.mxu0 0
    %346 = vmatpush1.bf16.msra.mxu0 %v327
    %347 = vmatprep.subr.bf16.mxu0 0
    %348 = vmatpush1.bf16.msra.mxu0 %v326
    %349 = vmatprep.subr.bf16.mxu0 0
    %350 = vmatpush1.bf16.msra.mxu0 %v325
    %351 = vmatprep.subr.bf16.mxu0 0
    %352 = vmatpush1.bf16.msra.mxu0 %v324
    %353 = vmatprep.subr.bf16.mxu0 0
    %354 = vmatpush1.bf16.msra.mxu0 %v323
    %355 = vmatprep.subr.bf16.mxu0 0
    %356 = vmatpush2.bf16.msra.mxu0 0
    %357 = vmatprep.subr.bf16.mxu0 0
    %358 = vmatpush2.bf16.msra.mxu0 0
    %359 = vmatprep.subr.bf16.mxu0 0
    %360 = vmatpush2.bf16.msra.mxu0 0
    %361 = vmatprep.subr.bf16.mxu0 0
    %362 = vmatpush2.bf16.msra.mxu0 0
    %363 = vmatprep.subr.bf16.mxu0 0
    %364 = vmatpush2.bf16.msra.mxu0 0
    %365 = vmatprep.subr.bf16.mxu0 0
    %366 = vmatpush2.bf16.msra.mxu0 0
    %367 = vmatprep.subr.bf16.mxu0 0
    %368 = vmatpush2.bf16.msra.mxu0 0
    %369 = vmatprep.subr.bf16.mxu0 0
    %370 = vmatpush2.bf16.msra.mxu0 0
    %371 = vmatprep.mubr.bf16.mxu0 0
    %372 = vmatmul.mubr.bf16.gmra.mxu0 %v269
    %v373 = vpop.f32.mrf.mxu0
    %v374 = vadd.f32 %v290, %v373
    %v375 = vpop.f32.mrf.mxu0
    %v376 = vpop.f32.mrf.mxu0
    %v377 = vpop.f32.mrf.mxu0
    %378 = vdwg.mxu0
    %v379 = vmax.f32 %v374, 0.0
    %v380 = vpack.c.bf16 %v379, %v379
    %v381 = vld [vmem:[#allocation9] sm:$0xf]
    %v382 = vld [vmem:[#allocation9 + $0x4] sm:$0xf]
    %v383 = vld [vmem:[#allocation9 + $0x8] sm:$0xf]
    %v384 = vld [vmem:[#allocation9 + $0xc] sm:$0xf]
    %v385 = vld [vmem:[#allocation9 + $0x10] sm:$0xf]
    %v386 = vld [vmem:[#allocation9 + $0x14] sm:$0xf]
    %v387 = vld [vmem:[#allocation9 + $0x18] sm:$0xf]
    %v388 = vld [vmem:[#allocation9 + $0x1c] sm:$0xf]
    %v389 = vld [vmem:[#allocation9 + $0x20] sm:$0xf]
    %v390 = vld [vmem:[#allocation9 + $0x24] sm:$0xf]
    %v391 = vld [vmem:[#allocation9 + $0x28] sm:$0xf]
    %v392 = vld [vmem:[#allocation9 + $0x2c] sm:$0xf]
    %v393 = vld [vmem:[#allocation9 + $0x30] sm:$0xf]
    %v394 = vld [vmem:[#allocation9 + $0x34] sm:$0xf]
    %v395 = vld [vmem:[#allocation9 + $0x38] sm:$0xf]
    %v396 = vld [vmem:[#allocation9 + $0x3c] sm:$0xf]
    %v397 = vld [vmem:[%s5 + $0x3] sm:$0x1]
    %v398 = vlaneseq
    %v399 = vshrl.u32 %v398, 7
    %v400 = vsub.s32 0, %v399
    %v401 = vrot.slane %v397, %v400
    %v418 = vunpack.c.l.b16 %v381
    %v419 = vunpack.c.l.b16 %v382
    %v420 = vunpack.c.l.b16 %v383
    %v421 = vunpack.c.l.b16 %v384
    %v422 = vunpack.c.l.b16 %v385
    %v423 = vunpack.c.l.b16 %v386
    %v424 = vunpack.c.l.b16 %v387
    %v425 = vunpack.c.l.b16 %v388
    %v426 = vunpack.c.l.b16 %v389
    %v427 = vunpack.c.l.b16 %v390
    %v428 = vunpack.c.l.b16 %v391
    %v429 = vunpack.c.l.b16 %v392
    %v430 = vunpack.c.l.b16 %v393
    %v431 = vunpack.c.l.b16 %v394
    %v432 = vunpack.c.l.b16 %v395
    %v433 = vunpack.c.l.b16 %v396
    %v434 = vpack.c.b16 %v419, %v418
    %v435 = vpack.c.b16 %v421, %v420
    %v436 = vpack.c.b16 %v423, %v422
    %v437 = vpack.c.b16 %v425, %v424
    %v438 = vpack.c.b16 %v427, %v426
    %v439 = vpack.c.b16 %v429, %v428
    %v440 = vpack.c.b16 %v431, %v430
    %v441 = vpack.c.b16 %v433, %v432
    %450 = vmatprep.subr.bf16.mxu0 0
    %451 = vmatpush1.bf16.msra.mxu0 %v441
    %452 = vmatprep.subr.bf16.mxu0 0
    %453 = vmatpush1.bf16.msra.mxu0 %v440
    %454 = vmatprep.subr.bf16.mxu0 0
    %455 = vmatpush1.bf16.msra.mxu0 %v439
    %456 = vmatprep.subr.bf16.mxu0 0
    %457 = vmatpush1.bf16.msra.mxu0 %v438
    %458 = vmatprep.subr.bf16.mxu0 0
    %459 = vmatpush1.bf16.msra.mxu0 %v437
    %460 = vmatprep.subr.bf16.mxu0 0
    %461 = vmatpush1.bf16.msra.mxu0 %v436
    %462 = vmatprep.subr.bf16.mxu0 0
    %463 = vmatpush1.bf16.msra.mxu0 %v435
    %464 = vmatprep.subr.bf16.mxu0 0
    %465 = vmatpush1.bf16.msra.mxu0 %v434
    %466 = vmatprep.subr.bf16.mxu0 0
    %467 = vmatpush2.bf16.msra.mxu0 0
    %468 = vmatprep.subr.bf16.mxu0 0
    %469 = vmatpush2.bf16.msra.mxu0 0
    %470 = vmatprep.subr.bf16.mxu0 0
    %471 = vmatpush2.bf16.msra.mxu0 0
    %472 = vmatprep.subr.bf16.mxu0 0
    %473 = vmatpush2.bf16.msra.mxu0 0
    %474 = vmatprep.subr.bf16.mxu0 0
    %475 = vmatpush2.bf16.msra.mxu0 0
    %476 = vmatprep.subr.bf16.mxu0 0
    %477 = vmatpush2.bf16.msra.mxu0 0
    %478 = vmatprep.subr.bf16.mxu0 0
    %479 = vmatpush2.bf16.msra.mxu0 0
    %480 = vmatprep.subr.bf16.mxu0 0
    %481 = vmatpush2.bf16.msra.mxu0 0
    %482 = vmatprep.mubr.bf16.mxu0 0
    %483 = vmatmul.mubr.bf16.gmra.mxu0 %v380
    %v484 = vpop.f32.mrf.mxu0
    %v485 = vadd.f32 %v401, %v484
    %v486 = vpop.f32.mrf.mxu0
    %v487 = vpop.f32.mrf.mxu0
    %v488 = vpop.f32.mrf.mxu0
    %489 = vdwg.mxu0
    %vm490 = vcmask 31744
    %491 = vst.msk [vmem:[%s6] sm:$0xff] %vm490, %v485
    // Predicated region
    $region46: #{tpu_custom_call.1} parent=1 // pred_check
      _
    $region47: #{tpu_custom_call.1} parent=1 // pred_check_branch
      %493 = sbr.rel (0) target = $region49
    $region48: #{tpu_custom_call.1} parent=1 // pred_region
      _
    $region49: #{tpu_custom_call.1} parent=1 // pred_fallthru
      _
    // Predicated region
    $region50: #{tpu_custom_call.1} parent=1 // pred_check
      _
    $region51: #{tpu_custom_call.1} parent=1 // pred_check_branch
      %495 = sbr.rel (0) target = $region53
    $region52: #{tpu_custom_call.1} parent=1 // pred_region
      _
    $region53: #{tpu_custom_call.1} parent=1 // pred_fallthru
      _
    %496 = vsyncpa [#allocation3], 1
    %497 = vsyncpa [#allocation5], 1
    %498 = vsyncpa [#allocation8], 1

</llo_original>
